<compile_context>
chip_gen: v7x
topology: tpu7x:2x2x1
jax: 0.10.0
libtpu: 0.0.40
codegen_flags: <defaults>
</compile_context>

<pallas_src>
import jax
import jax.numpy as jnp
from jax.experimental import pallas as pl
from jax.experimental.pallas import tpu as pltpu


_LANES = 128      # vreg lane width (last dim)
_SUBLANES = 8     # vreg sublane depth (second-to-last dim, f32)
_MAX_TILE_ROWS = 1024   # (1024, 128) f32 tile = 512 KiB -> safe for v7x 64 MiB VMEM


# ----------------------------------------------------------------------------
# Kernels
# ----------------------------------------------------------------------------
def _identity_kernel(param_ref, out_ref):
    # forward(): return self.parameter  -> identity copy of the current block.
    out_ref[...] = param_ref[...]


def _clamp_kernel(param_ref, bounds_ref, out_ref):
    # project_parameters(): clamp each parameter to its feasible interval.
    # bounds_ref packs [lower; upper] along its leading axis.
    b = bounds_ref[...]
    out_ref[...] = jnp.clip(param_ref[...], b[0], b[1])


# ----------------------------------------------------------------------------
# Tiling helper: sublane/lane-dense layout for large P
# ----------------------------------------------------------------------------
def _tiling(P):
    """Return (rows, tile_rows) for the tiled path, or None for the tiny path."""
    if P % (_LANES * _SUBLANES) != 0:
        return None
    rows = P // _LANES
    tile_rows = min(rows, _MAX_TILE_ROWS)
    while rows % tile_rows:          # rows is a multiple of 8, so this terminates
        tile_rows -= _SUBLANES
    return rows, tile_rows


# ----------------------------------------------------------------------------
# Wrappers
# ----------------------------------------------------------------------------
def forward(parameter):
    """Pallas equivalent of DeterministicParameterModel.forward() (identity)."""
    P = parameter.shape[-1]
    tiling = _tiling(P)

    if tiling is None:
        # Tiny P: single full-array block (block == array satisfies (8,128) rule).
        return pl.pallas_call(
            _identity_kernel,
            out_shape=jax.ShapeDtypeStruct(parameter.shape, parameter.dtype),
            in_specs=[pl.BlockSpec(parameter.shape, lambda: (0, 0))],
            out_specs=pl.BlockSpec(parameter.shape, lambda: (0, 0)),
            input_output_aliases={0: 0},
        )(parameter)

    rows, tile_rows = tiling
    x = parameter.reshape(rows, _LANES)              # sublane/lane-dense slabs
    out = pl.pallas_call(
        _identity_kernel,
        out_shape=jax.ShapeDtypeStruct((rows, _LANES), parameter.dtype),
        grid=(rows // tile_rows,),
        in_specs=[pl.BlockSpec((tile_rows, _LANES), lambda i: (i, 0))],
        out_specs=pl.BlockSpec((tile_rows, _LANES), lambda i: (i, 0)),
        input_output_aliases={0: 0},
        compiler_params=pltpu.CompilerParams(dimension_semantics=("parallel",)),
    )(x)
    return out.reshape(parameter.shape)


def project_parameters(parameter, bounds):
    """Clamp parameter (1, P) into [bounds[0], bounds[1]] (bounds is (2, P))."""
    P = parameter.shape[-1]
    tiling = _tiling(P)

    if tiling is None:
        return pl.pallas_call(
            _clamp_kernel,
            out_shape=jax.ShapeDtypeStruct(parameter.shape, parameter.dtype),
            in_specs=[
                pl.BlockSpec(parameter.shape, lambda: (0, 0)),
                pl.BlockSpec(bounds.shape, lambda: (0, 0)),
            ],
            out_specs=pl.BlockSpec(parameter.shape, lambda: (0, 0)),
            input_output_aliases={0: 0},
        )(parameter, bounds)

    rows, tile_rows = tiling
    x = parameter.reshape(rows, _LANES)
    b = bounds.reshape(2, rows, _LANES)
    out = pl.pallas_call(
        _clamp_kernel,
        out_shape=jax.ShapeDtypeStruct((rows, _LANES), parameter.dtype),
        grid=(rows // tile_rows,),
        in_specs=[
            pl.BlockSpec((tile_rows, _LANES), lambda i: (i, 0)),
            pl.BlockSpec((2, tile_rows, _LANES), lambda i: (0, i, 0)),
        ],
        out_specs=pl.BlockSpec((tile_rows, _LANES), lambda i: (i, 0)),
        input_output_aliases={0: 0},
        compiler_params=pltpu.CompilerParams(dimension_semantics=("parallel",)),
    )(x, b)
    return out.reshape(parameter.shape)


class DeterministicParameterModel:
    """JAX/Pallas port of the PyTorch DeterministicParameterModel."""

    def __init__(self, param_dim, feasible_set, init=None, key=None):
        # feasible_set: dict name -> (lo, hi), one entry per parameter.
        self.feasible_set = feasible_set
        lo = jnp.asarray([feasible_set[k][0] for k in feasible_set],
                         dtype=jnp.float32).reshape(1, param_dim)
        hi = jnp.asarray([feasible_set[k][1] for k in feasible_set],
                         dtype=jnp.float32).reshape(1, param_dim)
        # Pack bounds into a single (2, P) array -> one DMA stream in the kernel.
        self.bounds = jnp.concatenate([lo, hi], axis=0)

        if init is not None:
            # nn.init.constant_ per entry
            self.parameter = jnp.asarray(init, dtype=jnp.float32).reshape(1, param_dim)
        else:
            # nn.init.uniform_(lo, hi) per entry, deterministic via PRNGKey
            if key is None:
                key = jax.random.PRNGKey(0)
            u = jax.random.uniform(key, (1, param_dim), dtype=jnp.float32)
            self.parameter = lo + u * (hi - lo)

    @property
    def lower(self):
        return self.bounds[0:1]

    @property
    def upper(self):
        return self.bounds[1:2]

    def forward(self):
        """Returns a vector of parameters, shape (1, P) — exact pass-through."""
        return forward(self.parameter)

    def project_parameters(self):
        self.parameter = project_parameters(self.parameter, self.bounds)

    def project_and_forward(self):
        """Fused clamp + return in a single pallas_call (one launch, one DMA pass)."""
        self.parameter = project_parameters(self.parameter, self.bounds)
        return self.parameter


# ----------------------------------------------------------------------------
# Demo
# ----------------------------------------------------------------------------
if __name__ == "__main__":
    key = jax.random.PRNGKey(0)

    # --- small parameter space (matches the module: P tiny, shape (1, P)) ---
    P = 8
    feasible_set = {f"theta_{i}": (-1.0 - 0.25 * i, 1.0 + 0.25 * i) for i in range(P)}
    model = DeterministicParameterModel(P, feasible_set, init=None, key=key)

    out = jax.block_until_ready(model.forward())
    assert out.shape == (1, P) and out.dtype == jnp.float32
    # Forward must be an exact pass-through of the parameter tensor.
    assert bool(jnp.all(out == model.parameter))

    # Fused project + forward (single pallas_call).
    proj = jax.block_until_ready(model.project_and_forward())
    assert bool(jnp.all(proj >= model.lower)) and bool(jnp.all(proj <= model.upper))

    # --- large P: exercises the sublane/lane-dense tiled path + parallel grid ---
    P2 = 2 * _MAX_TILE_ROWS * _LANES          # 262,144 params -> (2048, 128), grid=(2,)
    k1, k2, k3 = jax.random.split(key, 3)
    lo2 = -jnp.abs(jax.random.normal(k1, (1, P2), jnp.float32)) - 0.5
    hi2 = jnp.abs(jax.random.normal(k2, (1, P2), jnp.float32)) + 0.5
    param2 = jax.random.normal(k3, (1, P2), jnp.float32) * 3.0
    bounds2 = jnp.concatenate([lo2, hi2], axis=0)

    fwd2 = jax.block_until_ready(forward(param2))
    assert bool(jnp.all(fwd2 == param2))

    proj2 = jax.block_until_ready(project_parameters(param2, bounds2))
    assert bool(jnp.allclose(proj2, jnp.clip(param2, lo2, hi2)))

    print("KERNEL_OK")
</pallas_src>

<mosaic_0001>
module attributes {stable_mosaic.version = 11 : i64} {
  func.func @_identity_kernel(%arg0: memref<1x8xf32, #tpu.memory_space<vmem>>, %arg1: memref<1x8xf32, #tpu.memory_space<vmem>>) attributes {dimension_semantics = [], scalar_prefetch = 0 : i64, scratch_operands = 0 : i64, tpu.core_type = #tpu.core_type<tc>} {
    %c0 = arith.constant 0 : index
    %c0_0 = arith.constant 0 : index
    %0 = vector.load %arg0[%c0, %c0_0] : memref<1x8xf32, #tpu.memory_space<vmem>>, vector<1x8xf32>
    %c0_1 = arith.constant 0 : index
    %c0_2 = arith.constant 0 : index
    %1 = vector.load %arg1[%c0_1, %c0_2] : memref<1x8xf32, #tpu.memory_space<vmem>>, vector<1x8xf32>
    tpu.vector_store %arg1[%c0_1, %c0_2], %0 {strides = array<i32>} : memref<1x8xf32, #tpu.memory_space<vmem>>, vector<1x8xf32>,
    return
  }
}

</mosaic_0001>

<llo_original>
// kernel: tpu_custom_call.1
$region0: #{tpu_custom_call.1}
  #allocation0 [shape = 'u32[]', space=smem, size = 0x4, offset = 0x4, fixed_abs, tag = 'smem constant byte address 0x4 - core index']
  #allocation1 [shape = 'u32[144,128]{1,0:T(1,128)}', space=vmem, size = 0x12000, scoped, tag = 'internal scratch']
  %s0 = inlined_call_operand.hbm [shape: f32[1,8], index: 0, kind: input, shape index: {}, may-alias: {0,1}]
  %s1 = inlined_call_operand.hbm [shape: f32[1,8], index: 1, kind: output, shape index: {}, may-alias: {0,1}]
  %s2 = sld [smem:[#allocation0]]
  $region18: #{tpu_custom_call.1} parent=0
    _
  %s4 = ssub.s32 1, %s2
  %s5 = scalar_select 0, %s4, %s2
  $region1: #{tpu_custom_call.1} parent=0
    #allocation2 [shape = 'u8[512]{0}', space=vmem, size = 0x400, scoped, tag = 'input window, operand 0, single buffered']
    #allocation3 [shape = 's32[1]{0}', space=sflag, size = 0x4, scoped, tag = 'scoped memory for tpu_custom_call.1']
    #allocation4 [shape = 's32[1]{0}', space=sflag, size = 0x4, scoped, tag = 'scoped memory for tpu_custom_call.1']
    #allocation5 [shape = 'u8[512]{0}', space=vmem, size = 0x400, scoped, tag = 'output window, operand 0, single buffered']
    %6 = vsyncpa [#allocation3], 0
    %7 = vsyncpa [#allocation4], 0
    // Predicated region
    $region2: #{tpu_custom_call.1} parent=1 // pred_check
      _
    $region3: #{tpu_custom_call.1} parent=1 // pred_check_branch
      %9 = sbr.rel (0) target = $region5
    $region4: #{tpu_custom_call.1} parent=1 // pred_region
      %s11 = ssub.s32 16, 16
      %12 = vsyncadd [#allocation3], %s11
      %s14 = sshll.u32 [#allocation2], 4
      %s15 = int_to_ptr.vmem [resolvable:$true] %s14
      %17 = dma.hbm_to_vmem [thread:$0]  %s0, 16, %s15, [#allocation3]
    $region5: #{tpu_custom_call.1} parent=1 // pred_fallthru
      _
    // Predicated region
    $region6: #{tpu_custom_call.1} parent=1 // pred_check
      _
    $region7: #{tpu_custom_call.1} parent=1 // pred_check_branch
      %19 = sbr.rel (0) target = $region9
    $region8: #{tpu_custom_call.1} parent=1 // pred_region
      %20 = dma.done [#allocation3], 16
    $region9: #{tpu_custom_call.1} parent=1 // pred_fallthru
      _
    %v21 = vld [vmem:[#allocation2] sm:$0x1]
    %vm22 = vcmask 57344
    %23 = vst.msk [vmem:[#allocation5] sm:$0x1] %vm22, %v21
    // Predicated region
    $region10: #{tpu_custom_call.1} parent=1 // pred_check
      _
    $region11: #{tpu_custom_call.1} parent=1 // pred_check_branch
      %25 = sbr.rel (0) target = $region13
    $region12: #{tpu_custom_call.1} parent=1 // pred_region
      %s27 = ssub.s32 16, 16
      %28 = vsyncadd [#allocation4], %s27
      %s30 = sshll.u32 [#allocation5], 4
      %s31 = int_to_ptr.vmem [resolvable:$true] %s30
      %33 = dma.vmem_to_hbm [thread:$0]  %s31, 16, %s1, [#allocation4]
    $region13: #{tpu_custom_call.1} parent=1 // pred_fallthru
      _
    // Predicated region
    $region14: #{tpu_custom_call.1} parent=1 // pred_check
      _
    $region15: #{tpu_custom_call.1} parent=1 // pred_check_branch
      %35 = sbr.rel (0) target = $region17
    $region16: #{tpu_custom_call.1} parent=1 // pred_region
      %36 = dma.done [#allocation4], 16
    $region17: #{tpu_custom_call.1} parent=1 // pred_fallthru
      _
    %37 = vsyncpa [#allocation3], 1
    %38 = vsyncpa [#allocation4], 1

</llo_original>
